<compile_context>
chip_gen: v5e
topology: v5e:2x2
jax: 0.10.0
libtpu: 0.0.40
codegen_flags: <defaults>
</compile_context>

<pallas_src>
import math

import jax
import jax.numpy as jnp
from jax.experimental import pallas as pl
from jax.experimental.pallas import tpu as pltpu

_BLOCK_BYTES = 2 * 1024 * 1024      # ~2 MiB per streamed block
_MAX_LANE_WIDTH = 4096              # widest slab column count we form
_VMEM_LIMIT = 32 * 1024 * 1024      # safe on v5e / v6e / v7x


def _divide_kernel(a_ref, b_ref, o_ref):
    # Elementwise true division on the current VMEM tile (VPU + EUP path).
    # b_ref may be (tr, C) (full divisor), (tr, 1) (row-broadcast divisor) or
    # (1, 1) (scalar divisor); in-kernel broadcasting covers all three so a
    # broadcast divisor never has to be materialized in HBM.
    o_ref[...] = (a_ref[...] / b_ref[...]).astype(o_ref.dtype)


def _sublane(dtype):
    # Rows per packed sublane group: 8 for 4-byte, 16 for 2-byte, 32 for 1-byte.
    return max(8, 32 // jnp.dtype(dtype).itemsize)


def _row_tile(n_rows, n_cols, dtype):
    """Largest row tile (multiple of the sublane pack) of ~_BLOCK_BYTES."""
    sub = _sublane(dtype)
    tr = _BLOCK_BYTES // max(1, n_cols * jnp.dtype(dtype).itemsize)
    tr = max(sub, (tr // sub) * sub)
    return n_rows if tr >= n_rows else tr


def _flat_slab(x, total, sub, pad_value=0):
    """Reshape a full-size operand into a lane-dense 2-D slab.

    Prefers a pad-free factorization (rows, cols) with cols a wide multiple of
    128 and rows >= the sublane pack; pads only when total % 128 != 0.
    Returns (slab, rows, cols, pad_elems).
    """
    fallback = None
    for cols in (_MAX_LANE_WIDTH, 2048, 1024, 512, 256, 128):
        if total % cols == 0:
            rows = total // cols
            if fallback is None:
                fallback = (rows, cols)
            if rows >= sub:
                return x.reshape(rows, cols), rows, cols, 0
    if fallback is not None:
        rows, cols = fallback
        return x.reshape(rows, cols), rows, cols, 0
    # Rare case: element count not a multiple of 128 -> one flat pad copy.
    cols = min(1024, pl.cdiv(total, 128) * 128)
    rows = pl.cdiv(total, cols)
    pad = rows * cols - total
    flat = jnp.pad(x.reshape(-1), (0, pad), constant_values=pad_value)
    return flat.reshape(rows, cols), rows, cols, pad


def _restore(out2, out_shape, total, pad):
    if pad:
        return out2.reshape(-1)[:total].reshape(out_shape)
    return out2.reshape(out_shape)


def _call_divide(a2, b2, b_mode, out_dtype):
    n_rows, n_cols = a2.shape
    tr = _row_tile(n_rows, n_cols, out_dtype)
    if b_mode == "full":        # divisor streamed at full size
        b_spec = pl.BlockSpec((tr, n_cols), lambda i: (i, 0))
    elif b_mode == "row":       # (n_rows, 1) divisor, broadcast along lanes
        b_spec = pl.BlockSpec((tr, 1), lambda i: (i, 0))
    else:                       # "scalar": (1, 1) divisor, re-read every tile
        b_spec = pl.BlockSpec((1, 1), lambda i: (0, 0))

    return pl.pallas_call(
        _divide_kernel,
        out_shape=jax.ShapeDtypeStruct((n_rows, n_cols), out_dtype),
        grid_spec=pltpu.PrefetchScalarGridSpec(
            num_scalar_prefetch=0,
            grid=(pl.cdiv(n_rows, tr),),
            in_specs=[
                pl.BlockSpec((tr, n_cols), lambda i: (i, 0)),
                b_spec,
            ],
            out_specs=pl.BlockSpec((tr, n_cols), lambda i: (i, 0)),
        ),
        compiler_params=pltpu.CompilerParams(
            dimension_semantics=("parallel",),   # lets v7x split across 2 TCs
            vmem_limit_bytes=_VMEM_LIMIT,
        ),
    )(a2, b2)


def qdivide(x_left, x_right):
    """torch.divide(x_left, x_right) with NumPy-style broadcasting."""
    a = jnp.asarray(x_left)
    b = jnp.asarray(x_right)

    # dtype promotion matching torch.divide (always true / floating division)
    out_dtype = jnp.promote_types(a.dtype, b.dtype)
    if not jnp.issubdtype(out_dtype, jnp.floating):
        out_dtype = jnp.float32
    a = a.astype(out_dtype)
    b = b.astype(out_dtype)

    out_shape = jnp.broadcast_shapes(a.shape, b.shape)
    total = math.prod(out_shape) if out_shape else 1
    if total == 0:
        return jnp.zeros(out_shape, out_dtype)

    # The dividend is always streamed at full size.
    if a.shape != out_shape:
        a = jnp.broadcast_to(a, out_shape)

    sub = _sublane(out_dtype)
    itemsize = jnp.dtype(out_dtype).itemsize

    # --- path 1: scalar divisor --------------------------------------------
    if b.size == 1:
        a2, _, _, pad = _flat_slab(a, total, sub)
        out2 = _call_divide(a2, b.reshape(1, 1), "scalar", out_dtype)
        return _restore(out2, out_shape, total, pad)

    # --- path 2: divisor broadcast only over trailing dims (e.g. (1,C,1,1)) -
    nd = len(out_shape)
    b_shape = (1,) * (nd - b.ndim) + b.shape
    k = 0
    while k < nd and b_shape[nd - 1 - k] == 1:
        k += 1
    if 0 < k < nd:
        n_cols = math.prod(out_shape[nd - k:])
        n_rows = math.prod(out_shape[:nd - k])
        # Worth it only when the collapsed row is lane-dense and a minimal
        # (sub, n_cols) block still fits comfortably in VMEM.
        if n_cols >= 128 and n_cols * itemsize * sub <= 2 * _BLOCK_BYTES:
            a2 = a.reshape(n_rows, n_cols)
            b_lead = jnp.broadcast_to(b.reshape(b_shape[:nd - k]),
                                      out_shape[:nd - k])   # tiny: n_rows elems
            b2 = b_lead.reshape(n_rows, 1)
            out2 = _call_divide(a2, b2, "row", out_dtype)
            return out2.reshape(out_shape)

    # --- fallback: general broadcast -> stream both operands at full size ---
    if b.shape != out_shape:
        b = jnp.broadcast_to(b, out_shape)
    a2, _, _, pad = _flat_slab(a, total, sub)
    b2, _, _, _ = _flat_slab(b, total, sub, pad_value=1)
    out2 = _call_divide(a2, b2, "full", out_dtype)
    return _restore(out2, out_shape, total, pad)


if __name__ == "__main__":
    key = jax.random.PRNGKey(0)
    k1, k2, k3 = jax.random.split(key, 3)

    # NCHW inputs, small shapes (per-channel divisor kept away from zero).
    x_left = jax.random.normal(k1, (2, 4, 16, 16), dtype=jnp.float32)
    x_right = jax.random.uniform(k2, (1, 4, 1, 1), dtype=jnp.float32,
                                 minval=0.5, maxval=2.0)

    qdiv = jax.jit(qdivide)

    # per-channel broadcast divisor (row-broadcast path)
    out = jax.block_until_ready(qdiv(x_left, x_right))
    ref = x_left / x_right
    assert out.shape == ref.shape and out.dtype == ref.dtype
    assert jnp.allclose(out, ref, rtol=1e-6, atol=1e-6)

    # same-shape divisor (general streamed path)
    x_full = jax.random.uniform(k3, (2, 4, 16, 16), dtype=jnp.float32,
                                minval=0.5, maxval=2.0)
    out_full = jax.block_until_ready(qdiv(x_left, x_full))
    assert jnp.allclose(out_full, x_left / x_full, rtol=1e-6, atol=1e-6)

    # scalar divisor (scalar path)
    out_sc = jax.block_until_ready(qdiv(x_left, jnp.float32(2.0)))
    assert jnp.allclose(out_sc, x_left / 2.0, rtol=1e-6, atol=1e-6)

    print("KERNEL_OK")
</pallas_src>

<mosaic_0001>
module attributes {stable_mosaic.version = 11 : i64} {
  func.func @_divide_kernel(%arg0: i32, %arg1: memref<8x256xf32, #tpu.memory_space<vmem>>, %arg2: memref<8x1xf32, #tpu.memory_space<vmem>>, %arg3: memref<8x256xf32, #tpu.memory_space<vmem>>) attributes {dimension_semantics = [#tpu.dimension_semantics<parallel>], iteration_bounds = array<i64: 1>, scalar_prefetch = 0 : i64, scratch_operands = 0 : i64, tpu.core_type = #tpu.core_type<tc>, window_params = [{transform_indices = @transform_0, window_bounds = array<i64: 8, 256>}, {transform_indices = @transform_1, window_bounds = array<i64: 8, 1>}, {transform_indices = @transform_2, window_bounds = array<i64: 8, 256>}]} {
    %c0 = arith.constant 0 : index
    %c0_0 = arith.constant 0 : index
    %0 = vector.load %arg1[%c0, %c0_0] : memref<8x256xf32, #tpu.memory_space<vmem>>, vector<8x256xf32>
    %c0_1 = arith.constant 0 : index
    %c0_2 = arith.constant 0 : index
    %1 = vector.load %arg2[%c0_1, %c0_2] : memref<8x1xf32, #tpu.memory_space<vmem>>, vector<8x1xf32>
    %2 = vector.broadcast %1 : vector<8x1xf32> to vector<8x256xf32>
    %3 = arith.divf %0, %2 : vector<8x256xf32>
    %c0_3 = arith.constant 0 : index
    %c0_4 = arith.constant 0 : index
    %4 = vector.load %arg3[%c0_3, %c0_4] : memref<8x256xf32, #tpu.memory_space<vmem>>, vector<8x256xf32>
    tpu.vector_store %arg3[%c0_3, %c0_4], %3 {strides = array<i32>} : memref<8x256xf32, #tpu.memory_space<vmem>>, vector<8x256xf32>,
    return
  }
  func.func @transform_0(%arg0: i32) -> (i32, i32) {
    %c0_i32 = arith.constant 0 : i32
    %c0_i32_0 = arith.constant 0 : i32
    return %arg0, %c0_i32 : i32, i32
  }
  func.func @transform_1(%arg0: i32) -> (i32, i32) {
    %c0_i32 = arith.constant 0 : i32
    %c0_i32_0 = arith.constant 0 : i32
    return %arg0, %c0_i32 : i32, i32
  }
  func.func @transform_2(%arg0: i32) -> (i32, i32) {
    %c0_i32 = arith.constant 0 : i32
    %c0_i32_0 = arith.constant 0 : i32
    return %arg0, %c0_i32 : i32, i32
  }
}

</mosaic_0001>

<llo_original>
// kernel: qdivide.1
$region0: #{qdivide.1}
  #allocation0 [shape = 'u32[]', space=smem, size = 0x4, offset = 0x4, fixed_abs, tag = 'smem constant byte address 0x4 - core index']
  #allocation1 [shape = 'u32[72,128]{1,0:T(1,128)}', space=vmem, size = 0x9000, scoped, tag = 'internal scratch']
  %s0 = inlined_call_operand.vmem [shape: f32[8,256], index: 0, kind: input, shape index: {}]
  %s1 = inlined_call_operand.vmem [shape: f32[8,1], index: 1, kind: input, shape index: {}]
  %s2 = inlined_call_operand.vmem [shape: f32[8,256], index: 2, kind: output, shape index: {}]
  %s3 = sld [smem:[#allocation0]]
  $region18: #{qdivide.1} parent=0
    _
  %s5 = ssub.s32 1, %s3
  %s6 = scalar_select 0, %s5, %s3
  // Predicated region
  $region2: #{qdivide.1} parent=0 // pred_check
    _
  $region3: #{qdivide.1} parent=0 // pred_check_branch
    %8 = sbr.rel (0) target = $region5
  $region4: #{qdivide.1} parent=0 // pred_region
    _
  $region5: #{qdivide.1} parent=0 // pred_fallthru
    _
  // Predicated region
  $region6: #{qdivide.1} parent=0 // pred_check
    _
  $region7: #{qdivide.1} parent=0 // pred_check_branch
    %10 = sbr.rel (0) target = $region9
  $region8: #{qdivide.1} parent=0 // pred_region
    _
  $region9: #{qdivide.1} parent=0 // pred_fallthru
    _
  %v11 = vld [vmem:[%s0] sm:$0xff]
  %v12 = vld [vmem:[%s0 + $0x8] sm:$0xff]
  %v13 = vld [vmem:[%s1] sm:$0xff]
  %15 = vset.pattern.permute.xlu0 0
  %16 = vperm.xlu0 %15, %v13
  %v17 = vpop.permute.xlu0 %16
  %v19 = vrcp.pop %v17
  %v20 = vmul.f32 %v17, %v19
  %v21 = vsub.f32 1.0, %v20
  %v22 = vmul.f32 %v19, %v21
  %v23 = vadd.f32 %v19, %v22
  %vm24 = vweird.f32 %v17
  %vm25 = vweird.f32 %v19
  %vm26 = vmor %vm24, %vm25
  %v27 = vsel %vm26, %v19, %v23
  %v28 = vand.u32 2147483647, %v17
  %vm29 = vcmp.eq.f32.partialorder %v28, 8.507059e+37
  %v30 = vand.u32 %v17, 2147483648
  %v31 = vor.u32 1.1754944e-38, %v30
  %v32 = vsel %vm29, %v31, %v27
  %v33 = vmul.f32 %v11, %v32
  %v34 = vmul.f32 %v12, %v32
  %35 = vst [vmem:[%s2] sm:$0xff] %v33
  %36 = vst [vmem:[%s2 + $0x8] sm:$0xff] %v34
  // Predicated region
  $region10: #{qdivide.1} parent=0 // pred_check
    _
  $region11: #{qdivide.1} parent=0 // pred_check_branch
    %38 = sbr.rel (0) target = $region13
  $region12: #{qdivide.1} parent=0 // pred_region
    _
  $region13: #{qdivide.1} parent=0 // pred_fallthru
    _
  // Predicated region
  $region14: #{qdivide.1} parent=0 // pred_check
    _
  $region15: #{qdivide.1} parent=0 // pred_check_branch
    %40 = sbr.rel (0) target = $region17
  $region16: #{qdivide.1} parent=0 // pred_region
    _
  $region17: #{qdivide.1} parent=0 // pred_fallthru
    _

</llo_original>
